<compile_context>
chip_gen: v5e
topology: v5e:2x2
jax: 0.10.0
libtpu: 0.0.40
codegen_flags: <defaults>
</compile_context>

<pallas_src>
import functools

import jax
import jax.numpy as jnp
from jax.experimental import pallas as pl
from jax.experimental.pallas import tpu as pltpu


def _dsc_kernel(x_ref, wdw_ref, wpw_ref, beff_ref, o_ref, *, L, k, pad, use_mxu):
    # x_ref   : (C, Nt)   packed activations (lane axis = batch*length tile)
    # wdw_ref : (C, k)    depthwise filters
    # wpw_ref : (O, C)    pointwise (1x1) weights
    # beff_ref: (O, 1)    folded bias  (W_pw @ b_dw + b_pw)
    # o_ref   : (O, Nt)
    C, Nt = x_ref.shape
    O = o_ref.shape[0]

    x = x_ref[...].astype(jnp.float32)  # widen on load; accumulate in f32

    # Position of each lane inside its length-L sequence segment.  Tiles are
    # always aligned to sequence boundaries, so an in-tile iota suffices.
    lane = jax.lax.broadcasted_iota(jnp.int32, (C, Nt), 1)
    pos = lane % L

    # Depthwise conv: k taps; each tap = XLU roll + VPU select (zero padding
    # and batch isolation) + VPU FMA.
    dw = jnp.zeros((C, Nt), jnp.float32)
    for j in range(k):
        off = j - pad  # source offset of this tap
        if off == 0:
            shifted = x
        else:
            # np.roll semantics: result[q] = x[q - shift]  ->  shift = -off
            shifted = pltpu.roll(x, (-off) % Nt, 1)
        valid = (pos + off >= 0) & (pos + off < L)
        tap = jnp.where(valid, shifted, 0.0)
        dw = dw + wdw_ref[:, j:j + 1].astype(jnp.float32) * tap

    # Pointwise 1x1 conv (+ folded bias).
    if use_mxu:
        out = jnp.dot(wpw_ref[...].astype(jnp.float32), dw,
                      preferred_element_type=jnp.float32)
    else:
        # Tiny C/O: an (O x C)@(C x Nt) matmul would leave the MXU idle and
        # pay push/pop latency for nothing -> unrolled VPU broadcast-FMAs.
        out = jnp.zeros((O, Nt), jnp.float32)
        for c in range(C):
            out = out + wpw_ref[:, c:c + 1].astype(jnp.float32) * dw[c:c + 1, :]
    out = out + beff_ref[...].astype(jnp.float32)

    o_ref[...] = out.astype(o_ref.dtype)


def _pick_tile(B, L, max_lanes=4096):
    """Batch elements per tile.  Multiple tiles only when each tile's lane
    width (Bt*L) is a 128-multiple (keeps block shapes legal and the in-tile
    position masks aligned to sequence boundaries)."""
    best = None
    for bt in range(1, B):
        if B % bt == 0 and (bt * L) % 128 == 0 and bt * L <= max_lanes:
            best = bt
    return best if best is not None else B


def depthwise_separable_conv1d(x, w_dw, b_dw, w_pw, b_pw, k):
    """x: (B, C, L); w_dw: (C, k); b_dw: (C,); w_pw: (O, C); b_pw: (O,)."""
    B, C, L = x.shape
    O = w_pw.shape[0]
    assert k % 2 == 1, "'same' padding (k//2) matches nn.Conv1d only for odd k"
    pad = k // 2

    # Fold depthwise bias into the pointwise bias (exact):
    #   W_pw @ (dw + b_dw) + b_pw = W_pw @ dw + (W_pw @ b_dw + b_pw)
    b_eff = (w_pw.astype(jnp.float32) @ b_dw.astype(jnp.float32)
             + b_pw.astype(jnp.float32)).reshape(O, 1)

    # Lane-pack the batch: (B, C, L) -> (C, B*L); pad the lane axis to a
    # 128-multiple so stores are unmasked.  Padding columns are discarded.
    N = B * L
    bt = _pick_tile(B, L)
    n_tiles = B // bt
    if n_tiles > 1:
        Nt = bt * L                       # already a 128-multiple
        N_pad = N
    else:
        Nt = ((N + 127) // 128) * 128
        N_pad = Nt
    x_packed = jnp.swapaxes(x, 0, 1).reshape(C, N)
    if N_pad != N:
        x_packed = jnp.pad(x_packed, ((0, 0), (0, N_pad - N)))

    use_mxu = (C >= 32) and (O >= 32)

    kernel = functools.partial(_dsc_kernel, L=L, k=k, pad=pad, use_mxu=use_mxu)

    out_packed = pl.pallas_call(
        kernel,
        out_shape=jax.ShapeDtypeStruct((O, N_pad), x.dtype),
        grid_spec=pltpu.PrefetchScalarGridSpec(
            num_scalar_prefetch=0,
            grid=(n_tiles,),
            in_specs=[
                pl.BlockSpec((C, Nt), lambda i: (0, i)),   # packed activations
                pl.BlockSpec((C, k), lambda i: (0, 0)),    # depthwise weights
                pl.BlockSpec((O, C), lambda i: (0, 0)),    # pointwise weights
                pl.BlockSpec((O, 1), lambda i: (0, 0)),    # folded bias
            ],
            out_specs=pl.BlockSpec((O, Nt), lambda i: (0, i)),
        ),
        compiler_params=pltpu.CompilerParams(
            dimension_semantics=("parallel",)),
    )(x_packed, w_dw, w_pw, b_eff)

    out = out_packed[:, :N].reshape(O, B, L)
    return jnp.swapaxes(out, 0, 1)  # (B, O, L)


def _reference(x, w_dw, b_dw, w_pw, b_pw, k):
    """Pure-JAX reference of the same forward pass (unfolded biases)."""
    B, C, L = x.shape
    pad = k // 2
    xp = jnp.pad(x, ((0, 0), (0, 0), (pad, pad)))
    dw = jnp.zeros((B, C, L), jnp.float32)
    for j in range(k):
        dw = dw + w_dw[None, :, j:j + 1] * xp[:, :, j:j + L]
    dw = dw + b_dw[None, :, None]
    return jnp.einsum("oc,bcl->bol", w_pw, dw) + b_pw[None, :, None]


if __name__ == "__main__":
    # Module config: in_word=4, out_word=8, k=3, dim=1, bias=True
    B, C_in, C_out, L, K = 2, 4, 8, 16, 3

    key = jax.random.PRNGKey(0)
    kx, kdw, kpw, kbd, kbp = jax.random.split(key, 5)

    x = jax.random.normal(kx, (B, C_in, L), dtype=jnp.float32)

    # kaiming_normal_-style init on conv weights (fan_in scaling).
    w_dw = jax.random.normal(kdw, (C_in, K), jnp.float32) * jnp.sqrt(2.0 / (1 * K))
    w_pw = jax.random.normal(kpw, (C_out, C_in), jnp.float32) * jnp.sqrt(2.0 / (C_in * 1))
    # nn.Conv1d biases are initialized to 0 in the module; use small nonzero
    # values here so the bias-folding path is actually exercised.
    b_dw = 0.1 * jax.random.normal(kbd, (C_in,), jnp.float32)
    b_pw = 0.1 * jax.random.normal(kbp, (C_out,), jnp.float32)

    out = depthwise_separable_conv1d(x, w_dw, b_dw, w_pw, b_pw, K)
    out = jax.block_until_ready(out)

    ref = _reference(x, w_dw, b_dw, w_pw, b_pw, K)
    assert out.shape == (B, C_out, L)
    assert jnp.allclose(out, ref, atol=1e-5, rtol=1e-5), "mismatch vs reference"

    print("KERNEL_OK")
</pallas_src>

<mosaic_0001>
module attributes {stable_mosaic.version = 11 : i64} {
  func.func @_dsc_kernel(%arg0: i32, %arg1: memref<4x128xf32, #tpu.memory_space<vmem>>, %arg2: memref<4x3xf32, #tpu.memory_space<vmem>>, %arg3: memref<8x4xf32, #tpu.memory_space<vmem>>, %arg4: memref<8x1xf32, #tpu.memory_space<vmem>>, %arg5: memref<8x128xf32, #tpu.memory_space<vmem>>) attributes {dimension_semantics = [#tpu.dimension_semantics<parallel>], iteration_bounds = array<i64: 1>, scalar_prefetch = 0 : i64, scratch_operands = 0 : i64, tpu.core_type = #tpu.core_type<tc>, window_params = [{transform_indices = @transform_0, window_bounds = array<i64: 4, 128>}, {pipeline_mode = #tpu.pipeline_mode<synchronous>, transform_indices = @transform_1, window_bounds = array<i64: 4, 3>}, {pipeline_mode = #tpu.pipeline_mode<synchronous>, transform_indices = @transform_2, window_bounds = array<i64: 8, 4>}, {pipeline_mode = #tpu.pipeline_mode<synchronous>, transform_indices = @transform_3, window_bounds = array<i64: 8, 1>}, {transform_indices = @transform_4, window_bounds = array<i64: 8, 128>}]} {
    %c0 = arith.constant 0 : index
    %c0_0 = arith.constant 0 : index
    %0 = vector.load %arg1[%c0, %c0_0] : memref<4x128xf32, #tpu.memory_space<vmem>>, vector<4x128xf32>
    %1 = tpu.iota {dimensions = array<i32: 1>} : vector<4x128xi32>
    %c16_i32 = arith.constant 16 : i32
    %c0_i32 = arith.constant 0 : i32
    %2 = arith.cmpi eq, %c16_i32, %c0_i32 : i32
    %c1_i32 = arith.constant 1 : i32
    %3 = arith.select %2, %c1_i32, %c16_i32 : i32
    %4 = vector.broadcast %3 : i32 to vector<4x128xi32>
    %5 = arith.remsi %1, %4 : vector<4x128xi32>
    %c0_i32_1 = arith.constant 0 : i32
    %6 = vector.broadcast %c0_i32_1 : i32 to vector<4x128xi32>
    %7 = arith.cmpi ne, %5, %6 : vector<4x128xi32>
    %c0_i32_2 = arith.constant 0 : i32
    %8 = vector.broadcast %c0_i32_2 : i32 to vector<4x128xi32>
    %9 = arith.cmpi slt, %5, %8 : vector<4x128xi32>
    %c0_i32_3 = arith.constant 0 : i32
    %10 = arith.cmpi slt, %3, %c0_i32_3 : i32
    %11 = vector.broadcast %10 : i1 to vector<4x128xi1>
    %12 = vector.broadcast %11 : vector<4x128xi1> to vector<4x128xi1>
    %13 = arith.xori %9, %12 : vector<4x128xi1>
    %14 = arith.andi %13, %7 : vector<4x128xi1>
    %15 = vector.broadcast %3 : i32 to vector<4x128xi32>
    %16 = arith.addi %5, %15 : vector<4x128xi32>
    %17 = arith.select %14, %16, %5 : vector<4x128xi1>, vector<4x128xi32>
    %cst = arith.constant 0.000000e+00 : f32
    %18 = vector.broadcast %cst : f32 to vector<4x128xf32>
    %c1_i32_4 = arith.constant 1 : i32
    %19 = tpu.dynamic_rotate %0 by %c1_i32_4 dim 1 : vector<4x128xf32>, i32 -> vector<4x128xf32>
    %c-1_i32 = arith.constant -1 : i32
    %20 = vector.broadcast %c-1_i32 : i32 to vector<4x128xi32>
    %21 = arith.addi %17, %20 : vector<4x128xi32>
    %c0_i32_5 = arith.constant 0 : i32
    %22 = vector.broadcast %c0_i32_5 : i32 to vector<4x128xi32>
    %23 = arith.cmpi sge, %21, %22 : vector<4x128xi32>
    %c-1_i32_6 = arith.constant -1 : i32
    %24 = vector.broadcast %c-1_i32_6 : i32 to vector<4x128xi32>
    %25 = arith.addi %17, %24 : vector<4x128xi32>
    %c16_i32_7 = arith.constant 16 : i32
    %26 = vector.broadcast %c16_i32_7 : i32 to vector<4x128xi32>
    %27 = arith.cmpi slt, %25, %26 : vector<4x128xi32>
    %28 = arith.andi %23, %27 : vector<4x128xi1>
    %cst_8 = arith.constant 0.000000e+00 : f32
    %29 = vector.broadcast %cst_8 : f32 to vector<4x128xf32>
    %30 = arith.select %28, %19, %29 : vector<4x128xi1>, vector<4x128xf32>
    %c0_9 = arith.constant 0 : index
    %c0_10 = arith.constant 0 : index
    %31 = vector.load %arg2[%c0_9, %c0_10] : memref<4x3xf32, #tpu.memory_space<vmem>>, vector<4x1xf32>
    %32 = vector.broadcast %31 : vector<4x1xf32> to vector<4x128xf32>
    %33 = arith.mulf %32, %30 : vector<4x128xf32>
    %34 = arith.addf %18, %33 : vector<4x128xf32>
    %c0_i32_11 = arith.constant 0 : i32
    %35 = vector.broadcast %c0_i32_11 : i32 to vector<4x128xi32>
    %36 = arith.addi %17, %35 : vector<4x128xi32>
    %c0_i32_12 = arith.constant 0 : i32
    %37 = vector.broadcast %c0_i32_12 : i32 to vector<4x128xi32>
    %38 = arith.cmpi sge, %36, %37 : vector<4x128xi32>
    %c0_i32_13 = arith.constant 0 : i32
    %39 = vector.broadcast %c0_i32_13 : i32 to vector<4x128xi32>
    %40 = arith.addi %17, %39 : vector<4x128xi32>
    %c16_i32_14 = arith.constant 16 : i32
    %41 = vector.broadcast %c16_i32_14 : i32 to vector<4x128xi32>
    %42 = arith.cmpi slt, %40, %41 : vector<4x128xi32>
    %43 = arith.andi %38, %42 : vector<4x128xi1>
    %cst_15 = arith.constant 0.000000e+00 : f32
    %44 = vector.broadcast %cst_15 : f32 to vector<4x128xf32>
    %45 = arith.select %43, %0, %44 : vector<4x128xi1>, vector<4x128xf32>
    %c0_16 = arith.constant 0 : index
    %c1 = arith.constant 1 : index
    %46 = vector.load %arg2[%c0_16, %c1] : memref<4x3xf32, #tpu.memory_space<vmem>>, vector<4x1xf32>
    %47 = vector.broadcast %46 : vector<4x1xf32> to vector<4x128xf32>
    %48 = arith.mulf %47, %45 : vector<4x128xf32>
    %49 = arith.addf %34, %48 : vector<4x128xf32>
    %c127_i32 = arith.constant 127 : i32
    %50 = tpu.dynamic_rotate %0 by %c127_i32 dim 1 : vector<4x128xf32>, i32 -> vector<4x128xf32>
    %c1_i32_17 = arith.constant 1 : i32
    %51 = vector.broadcast %c1_i32_17 : i32 to vector<4x128xi32>
    %52 = arith.addi %17, %51 : vector<4x128xi32>
    %c0_i32_18 = arith.constant 0 : i32
    %53 = vector.broadcast %c0_i32_18 : i32 to vector<4x128xi32>
    %54 = arith.cmpi sge, %52, %53 : vector<4x128xi32>
    %c1_i32_19 = arith.constant 1 : i32
    %55 = vector.broadcast %c1_i32_19 : i32 to vector<4x128xi32>
    %56 = arith.addi %17, %55 : vector<4x128xi32>
    %c16_i32_20 = arith.constant 16 : i32
    %57 = vector.broadcast %c16_i32_20 : i32 to vector<4x128xi32>
    %58 = arith.cmpi slt, %56, %57 : vector<4x128xi32>
    %59 = arith.andi %54, %58 : vector<4x128xi1>
    %cst_21 = arith.constant 0.000000e+00 : f32
    %60 = vector.broadcast %cst_21 : f32 to vector<4x128xf32>
    %61 = arith.select %59, %50, %60 : vector<4x128xi1>, vector<4x128xf32>
    %c0_22 = arith.constant 0 : index
    %c2 = arith.constant 2 : index
    %62 = vector.load %arg2[%c0_22, %c2] : memref<4x3xf32, #tpu.memory_space<vmem>>, vector<4x1xf32>
    %63 = vector.broadcast %62 : vector<4x1xf32> to vector<4x128xf32>
    %64 = arith.mulf %63, %61 : vector<4x128xf32>
    %65 = arith.addf %49, %64 : vector<4x128xf32>
    %cst_23 = arith.constant 0.000000e+00 : f32
    %66 = vector.broadcast %cst_23 : f32 to vector<8x128xf32>
    %c0_24 = arith.constant 0 : index
    %c0_25 = arith.constant 0 : index
    %67 = vector.load %arg3[%c0_24, %c0_25] : memref<8x4xf32, #tpu.memory_space<vmem>>, vector<8x1xf32>
    %68 = vector.extract_strided_slice %65 {offsets = [0, 0], sizes = [1, 128], strides = [1, 1]} : vector<4x128xf32> to vector<1x128xf32>
    %69 = vector.broadcast %67 : vector<8x1xf32> to vector<8x128xf32>
    %70 = vector.broadcast %68 : vector<1x128xf32> to vector<8x128xf32>
    %71 = arith.mulf %69, %70 : vector<8x128xf32>
    %72 = arith.addf %66, %71 : vector<8x128xf32>
    %c0_26 = arith.constant 0 : index
    %c1_27 = arith.constant 1 : index
    %73 = vector.load %arg3[%c0_26, %c1_27] : memref<8x4xf32, #tpu.memory_space<vmem>>, vector<8x1xf32>
    %74 = vector.extract_strided_slice %65 {offsets = [1, 0], sizes = [1, 128], strides = [1, 1]} : vector<4x128xf32> to vector<1x128xf32>
    %75 = vector.broadcast %73 : vector<8x1xf32> to vector<8x128xf32>
    %76 = vector.broadcast %74 : vector<1x128xf32> to vector<8x128xf32>
    %77 = arith.mulf %75, %76 : vector<8x128xf32>
    %78 = arith.addf %72, %77 : vector<8x128xf32>
    %c0_28 = arith.constant 0 : index
    %c2_29 = arith.constant 2 : index
    %79 = vector.load %arg3[%c0_28, %c2_29] : memref<8x4xf32, #tpu.memory_space<vmem>>, vector<8x1xf32>
    %80 = vector.extract_strided_slice %65 {offsets = [2, 0], sizes = [1, 128], strides = [1, 1]} : vector<4x128xf32> to vector<1x128xf32>
    %81 = vector.broadcast %79 : vector<8x1xf32> to vector<8x128xf32>
    %82 = vector.broadcast %80 : vector<1x128xf32> to vector<8x128xf32>
    %83 = arith.mulf %81, %82 : vector<8x128xf32>
    %84 = arith.addf %78, %83 : vector<8x128xf32>
    %c0_30 = arith.constant 0 : index
    %c3 = arith.constant 3 : index
    %85 = vector.load %arg3[%c0_30, %c3] : memref<8x4xf32, #tpu.memory_space<vmem>>, vector<8x1xf32>
    %86 = vector.extract_strided_slice %65 {offsets = [3, 0], sizes = [1, 128], strides = [1, 1]} : vector<4x128xf32> to vector<1x128xf32>
    %87 = vector.broadcast %85 : vector<8x1xf32> to vector<8x128xf32>
    %88 = vector.broadcast %86 : vector<1x128xf32> to vector<8x128xf32>
    %89 = arith.mulf %87, %88 : vector<8x128xf32>
    %90 = arith.addf %84, %89 : vector<8x128xf32>
    %c0_31 = arith.constant 0 : index
    %c0_32 = arith.constant 0 : index
    %91 = vector.load %arg4[%c0_31, %c0_32] : memref<8x1xf32, #tpu.memory_space<vmem>>, vector<8x1xf32>
    %92 = vector.broadcast %91 : vector<8x1xf32> to vector<8x128xf32>
    %93 = arith.addf %90, %92 : vector<8x128xf32>
    %c0_33 = arith.constant 0 : index
    %c0_34 = arith.constant 0 : index
    %94 = vector.load %arg5[%c0_33, %c0_34] : memref<8x128xf32, #tpu.memory_space<vmem>>, vector<8x128xf32>
    tpu.vector_store %arg5[%c0_33, %c0_34], %93 {strides = array<i32>} : memref<8x128xf32, #tpu.memory_space<vmem>>, vector<8x128xf32>,
    return
  }
  func.func @transform_0(%arg0: i32) -> (i32, i32) {
    %c0_i32 = arith.constant 0 : i32
    %c0_i32_0 = arith.constant 0 : i32
    return %c0_i32, %arg0 : i32, i32
  }
  func.func @transform_1(%arg0: i32) -> (i32, i32) {
    %c0_i32 = arith.constant 0 : i32
    %c0_i32_0 = arith.constant 0 : i32
    %c0_i32_1 = arith.constant 0 : i32
    return %c0_i32, %c0_i32_0 : i32, i32
  }
  func.func @transform_2(%arg0: i32) -> (i32, i32) {
    %c0_i32 = arith.constant 0 : i32
    %c0_i32_0 = arith.constant 0 : i32
    %c0_i32_1 = arith.constant 0 : i32
    return %c0_i32, %c0_i32_0 : i32, i32
  }
  func.func @transform_3(%arg0: i32) -> (i32, i32) {
    %c0_i32 = arith.constant 0 : i32
    %c0_i32_0 = arith.constant 0 : i32
    %c0_i32_1 = arith.constant 0 : i32
    return %c0_i32, %c0_i32_0 : i32, i32
  }
  func.func @transform_4(%arg0: i32) -> (i32, i32) {
    %c0_i32 = arith.constant 0 : i32
    %c0_i32_0 = arith.constant 0 : i32
    return %c0_i32, %arg0 : i32, i32
  }
}

</mosaic_0001>

<llo_original>
// kernel: tpu_custom_call.1
$region0: #{tpu_custom_call.1}
  #allocation0 [shape = 'u32[]', space=smem, size = 0x4, offset = 0x4, fixed_abs, tag = 'smem constant byte address 0x4 - core index']
  #allocation1 [shape = 'u32[72,128]{1,0:T(1,128)}', space=vmem, size = 0x9000, scoped, tag = 'internal scratch']
  %s0 = inlined_call_operand.vmem [shape: f32[4,128], index: 0, kind: input, shape index: {}]
  %s1 = inlined_call_operand.vmem [shape: f32[4,3], index: 1, kind: input, shape index: {}]
  %s2 = inlined_call_operand.vmem [shape: f32[8,4], index: 2, kind: input, shape index: {}]
  %s3 = inlined_call_operand.vmem [shape: f32[8,1], index: 3, kind: input, shape index: {}]
  %s4 = inlined_call_operand.hbm [shape: f32[8,128], index: 4, kind: output, shape index: {}]
  %s5 = sld [smem:[#allocation0]]
  $region26: #{tpu_custom_call.1} parent=0
    _
  %s7 = ssub.s32 1, %s5
  %s8 = scalar_select 0, %s7, %s5
  $region1: #{tpu_custom_call.1} parent=0
    #allocation2 [shape = 'u8[4096]{0}', space=vmem, size = 0x1000, scoped, tag = 'output window, operand 0, single buffered']
    #allocation3 [shape = 's32[1]{0}', space=sflag, size = 0x4, scoped, tag = 'scoped memory for tpu_custom_call.1']
    %9 = vsyncpa [#allocation3], 0
    // Predicated region
    $region2: #{tpu_custom_call.1} parent=1 // pred_check
      _
    $region3: #{tpu_custom_call.1} parent=1 // pred_check_branch
      %11 = sbr.rel (0) target = $region5
    $region4: #{tpu_custom_call.1} parent=1 // pred_region
      _
    $region5: #{tpu_custom_call.1} parent=1 // pred_fallthru
      _
    // Predicated region
    $region6: #{tpu_custom_call.1} parent=1 // pred_check
      _
    $region7: #{tpu_custom_call.1} parent=1 // pred_check_branch
      %13 = sbr.rel (0) target = $region9
    $region8: #{tpu_custom_call.1} parent=1 // pred_region
      _
    $region9: #{tpu_custom_call.1} parent=1 // pred_fallthru
      _
    // Predicated region
    $region10: #{tpu_custom_call.1} parent=1 // pred_check
      _
    $region11: #{tpu_custom_call.1} parent=1 // pred_check_branch
      %15 = sbr.rel (0) target = $region13
    $region12: #{tpu_custom_call.1} parent=1 // pred_region
      _
    $region13: #{tpu_custom_call.1} parent=1 // pred_fallthru
      _
    // Predicated region
    $region14: #{tpu_custom_call.1} parent=1 // pred_check
      _
    $region15: #{tpu_custom_call.1} parent=1 // pred_check_branch
      %17 = sbr.rel (0) target = $region17
    $region16: #{tpu_custom_call.1} parent=1 // pred_region
      _
    $region17: #{tpu_custom_call.1} parent=1 // pred_fallthru
      _
    %v18 = vld [vmem:[%s0] sm:$0xf]
    %v19 = vlaneseq
    %v20 = vand.u32 %v19, 127
    %vm21 = vcmp.lt.s32.totalorder %v20, 0
    %v22 = vsub.s32 0, %v20
    %v23 = vsel %vm21, %v22, %v20
    %v24 = vshrl.u32 %v23, 4
    %v25 = vand.u32 %v23, 15
    %v26 = vsub.s32 0, %v25
    %v27 = vsel %vm21, %v26, %v25
    %vm28 = vcmp.ne.s32.totalorder %v27, 0
    %vm29 = vcmp.lt.s32.totalorder %v27, 0
    %vm30 = vmand %vm29, %vm28
    %v31 = vadd.s32 %v27, 16
    %v32 = vsel %vm30, %v31, %v27
    %33 = vrot.lane.b32.xlu0 %v18, 1
    %v34 = vpop.permute.xlu0 %33
    %v35 = vadd.s32 %v32, 4294967295
    %vm36 = vcmp.ge.s32.totalorder %v35, 0
    %vm37 = vcmp.lt.s32.totalorder %v35, 16
    %vm38 = vmand %vm36, %vm37
    %v39 = vsel %vm38, %v34, 0.0
    %v40 = vld [vmem:[%s1] sm:$0xf]
    %42 = vset.pattern.permute.xlu0 0
    %43 = vperm.xlu0 %42, %v40
    %v44 = vpop.permute.xlu0 %43
    %v46 = vmul.f32 %v44, %v39
    %v47 = vadd.f32 %v46, 0.0
    %vm48 = vcmp.ge.s32.totalorder %v32, 0
    %vm49 = vcmp.lt.s32.totalorder %v32, 16
    %vm50 = vmand %vm48, %vm49
    %v51 = vsel %vm50, %v18, 0.0
    %52 = vset.pattern.permute.xlu0 1
    %53 = vperm.xlu0 %52, %v40
    %v54 = vpop.permute.xlu0 %53
    %v56 = vmul.f32 %v54, %v51
    %v57 = vadd.f32 %v47, %v56
    %58 = vrot.lane.b32.xlu0 %v18, 127
    %v59 = vpop.permute.xlu0 %58
    %v60 = vadd.s32 %v32, 1
    %vm61 = vcmp.ge.s32.totalorder %v60, 0
    %vm62 = vcmp.lt.s32.totalorder %v60, 16
    %vm63 = vmand %vm61, %vm62
    %v64 = vsel %vm63, %v59, 0.0
    %65 = vset.pattern.permute.xlu0 2
    %66 = vperm.xlu0 %65, %v40
    %v67 = vpop.permute.xlu0 %66
    %v69 = vmul.f32 %v67, %v64
    %v70 = vadd.f32 %v57, %v69
    %v71 = vld [vmem:[%s2] sm:$0xff]
    %73 = vset.pattern.permute.xlu0 0
    %74 = vperm.xlu0 %73, %v71
    %v75 = vpop.permute.xlu0 %74
    %v77 = vperm.slane %v70, 0
    %v78 = vmul.f32 %v75, %v77
    %v79 = vadd.f32 %v78, 0.0
    %80 = vset.pattern.permute.xlu0 1
    %81 = vperm.xlu0 %80, %v71
    %v82 = vpop.permute.xlu0 %81
    %v84 = vperm.slane %v70, 1
    %v85 = vmul.f32 %v82, %v84
    %v86 = vadd.f32 %v79, %v85
    %87 = vset.pattern.permute.xlu0 2
    %88 = vperm.xlu0 %87, %v71
    %v89 = vpop.permute.xlu0 %88
    %v91 = vperm.slane %v70, 2
    %v92 = vmul.f32 %v89, %v91
    %v93 = vadd.f32 %v86, %v92
    %94 = vset.pattern.permute.xlu0 3
    %95 = vperm.xlu0 %94, %v71
    %v96 = vpop.permute.xlu0 %95
    %v98 = vperm.slane %v70, 3
    %v99 = vmul.f32 %v96, %v98
    %v100 = vadd.f32 %v93, %v99
    %v101 = vld [vmem:[%s3] sm:$0xff]
    %103 = vset.pattern.permute.xlu0 0
    %104 = vperm.xlu0 %103, %v101
    %v105 = vpop.permute.xlu0 %104
    %v107 = vadd.f32 %v100, %v105
    %108 = vst [vmem:[#allocation2] sm:$0xff] %v107
    // Predicated region
    $region18: #{tpu_custom_call.1} parent=1 // pred_check
      _
    $region19: #{tpu_custom_call.1} parent=1 // pred_check_branch
      %110 = sbr.rel (0) target = $region21
    $region20: #{tpu_custom_call.1} parent=1 // pred_region
      %112 = vsyncadd [#allocation3], 0
      %s114 = sshll.u32 [#allocation2], 4
      %s115 = int_to_ptr.vmem [resolvable:$true] %s114
      %s116 = sshll.u32 %s4, 4
      %s117 = int_to_ptr.hbm [resolvable:$true] %s116
      %119 = dma.vmem_to_hbm [thread:$0]  %s115, 128, %s117, [#allocation3]
    $region21: #{tpu_custom_call.1} parent=1 // pred_fallthru
      _
    // Predicated region
    $region22: #{tpu_custom_call.1} parent=1 // pred_check
      _
    $region23: #{tpu_custom_call.1} parent=1 // pred_check_branch
      %121 = sbr.rel (0) target = $region25
    $region24: #{tpu_custom_call.1} parent=1 // pred_region
      %123 = dma.done [#allocation3], 128
    $region25: #{tpu_custom_call.1} parent=1 // pred_fallthru
      _
    %124 = vsyncpa [#allocation3], 1

</llo_original>
